<compile_context>
chip_gen: v5e
topology: v5e:2x2
jax: 0.10.0
libtpu: 0.0.40
codegen_flags: <defaults>
</compile_context>

<pallas_src>
import functools

import jax
import jax.numpy as jnp
import numpy as np
from jax.experimental import pallas as pl
from jax.experimental.pallas import tpu as pltpu


def _round_up(x, m):
    return ((x + m - 1) // m) * m


# ----------------------------------------------------------------------------
# Kernel: one select per (tm, F) tile.  1 vld + 1 vsel + 1 vst per vreg;
# HBM-bandwidth bound on v5e / v6e / v7x alike.
# ----------------------------------------------------------------------------
def _freq_mask_kernel(x_ref, keep_ref, o_ref):
    # x_ref / o_ref: (tm, F) VMEM tiles; keep_ref: (1, F) float32 keep mask.
    x = x_ref[...]
    o_ref[...] = jnp.where(keep_ref[...] != 0.0, x, jnp.zeros((), x.dtype))


def _choose_tm(T, F, itemsize, tm_hint):
    """Time-tile size: dtype-aligned sublanes, ~12 MiB VMEM for the
    double-buffered input+output blocks (v5e default scoped VMEM is 16 MiB),
    >= ~8 grid steps for v7x megacore sharding / DMA-compute overlap, but
    never below 512 rows (per-step overhead amortization, mem-bound op)."""
    sub = {4: 8, 2: 16, 1: 32}.get(itemsize, 8)
    # (a) VMEM budget: double-buffered input + output (tm, F) blocks (4x).
    vmem_budget = 12 * 1024 * 1024
    tm_budget = max(sub, (vmem_budget // (4 * F * itemsize)) // sub * sub)
    # (b) target >= 8 grid steps, but (c) keep tiles >= 512 rows.
    steps_cap = max(512, _round_up(pl.cdiv(T, 8), sub))
    tm = min(_round_up(tm_hint, sub), tm_budget, steps_cap, _round_up(T, sub))
    return max(tm, sub)


def freq_mask_apply(x, keep, *, tm=1024):
    """Apply a precomputed (1, F) keep mask to x of shape (T, F)."""
    T, F = x.shape
    itemsize = jnp.dtype(x.dtype).itemsize
    tm = _choose_tm(T, F, itemsize, tm)
    grid = (pl.cdiv(T, tm),)

    return pl.pallas_call(
        _freq_mask_kernel,
        out_shape=jax.ShapeDtypeStruct((T, F), x.dtype),
        grid=grid,
        in_specs=[
            # Full freq extent: block dim == full array dim is exempt from
            # the (8, 128) rule, so no pad/slice round-trip is needed.
            pl.BlockSpec((tm, F), lambda i: (i, 0)),
            pl.BlockSpec((1, F), lambda i: (0, 0)),
        ],
        out_specs=pl.BlockSpec((tm, F), lambda i: (i, 0)),
        # Output aliases x.  Genuinely in-place only when the caller donates
        # x at the jit boundary (see __main__); otherwise XLA inserts a copy.
        input_output_aliases={0: 0},
        compiler_params=pltpu.CompilerParams(
            dimension_semantics=("parallel",)
        ),
    )(x, keep)


# ----------------------------------------------------------------------------
# Traceable parameter sampling + mask construction (no host sync, jit-safe).
# ----------------------------------------------------------------------------
def sample_freq_mask_params(key, *, n, p, freq):
    """f ~ U[0, p), f0 ~ U[0, freq - f)  (torch .random_ semantics)."""
    kf, kf0 = jax.random.split(key)
    f = jax.random.randint(kf, (n,), 0, p, dtype=jnp.int32)
    # max(freq - f, 1) clamp forces f0 = 0 if p > freq (torch would error).
    f0 = jax.random.randint(
        kf0, (n,), 0, jnp.maximum(freq - f, 1), dtype=jnp.int32
    )
    return f0, f


def build_keep_mask(f0, f, *, freq):
    """Combine n (f0, f) bands into a single (1, freq) float32 keep mask."""
    col = jnp.arange(freq, dtype=jnp.int32)
    inside = (col[None, :] >= f0[:, None]) & (col[None, :] < (f0 + f)[:, None])
    keep = jnp.logical_not(jnp.any(inside, axis=0))
    return keep.astype(jnp.float32).reshape(1, freq)


def freq_mask(x, key, *, n=1, p=12, training=True, tm=1024):
    """FreqMask forward pass. x: (time, freq)."""
    if not training:
        return x
    _, F = x.shape
    f0, f = sample_freq_mask_params(key, n=n, p=p, freq=F)
    keep = build_keep_mask(f0, f, freq=F)
    return freq_mask_apply(x, keep, tm=tm)


# TODO(synk): for wide F the remaining lever is to stop touching unmasked
# columns entirely (scalar-prefetch-driven column index_map over just the
# masked lane groups, aliased output) or, better, fuse the (1, F) keep mask
# into the producing op (log-mel front-end).  Kept the single full-width pass
# here for robustness; typical mel-bin counts (<= 128) fit one lane group.


if __name__ == "__main__":
    # Small shapes consistent with the module: x is 2D (time, freq).
    TIME, FREQ = 512, 128
    N_MASKS, P = 2, 12

    key = jax.random.PRNGKey(0)
    kx, kp = jax.random.split(key)
    x = jax.random.normal(kx, (TIME, FREQ), dtype=jnp.float32)

    # Host copy for the reference check (x's device buffer is donated below).
    x_host = np.asarray(jax.device_get(x))

    # Whole augmentation (sampling + mask build + kernel) lives inside jit.
    # donate_argnums=0 makes input_output_aliases={0: 0} genuinely in-place.
    freq_mask_jit = jax.jit(
        functools.partial(freq_mask, n=N_MASKS, p=P, training=True),
        donate_argnums=0,
    )
    y = jax.block_until_ready(freq_mask_jit(x, kp))

    # Reference: re-derive the same (deterministic) band parameters, numpy loop.
    f0_d, f_d = sample_freq_mask_params(kp, n=N_MASKS, p=P, freq=FREQ)
    f0_h = np.asarray(jax.device_get(f0_d))
    f_h = np.asarray(jax.device_get(f_d))
    y_ref = x_host.copy()
    for i in range(N_MASKS):
        f0_i, f_i = int(f0_h[i]), int(f_h[i])
        y_ref[:, f0_i:f0_i + f_i] = 0.0
    np.testing.assert_allclose(np.asarray(jax.device_get(y)), y_ref)

    print("KERNEL_OK")
</pallas_src>

<mosaic_0001>
module attributes {stable_mosaic.version = 11 : i64} {
  func.func @_freq_mask_kernel(%arg0: i32, %arg1: memref<512x128xf32, #tpu.memory_space<vmem>>, %arg2: memref<1x128xf32, #tpu.memory_space<vmem>>, %arg3: memref<512x128xf32, #tpu.memory_space<vmem>>) attributes {dimension_semantics = [#tpu.dimension_semantics<parallel>], iteration_bounds = array<i64: 1>, scalar_prefetch = 0 : i64, scratch_operands = 0 : i64, tpu.core_type = #tpu.core_type<tc>, window_params = [{transform_indices = @transform_0, window_bounds = array<i64: 512, 128>}, {pipeline_mode = #tpu.pipeline_mode<synchronous>, transform_indices = @transform_1, window_bounds = array<i64: 1, 128>}, {transform_indices = @transform_2, window_bounds = array<i64: 512, 128>}]} {
    %c0 = arith.constant 0 : index
    %c0_0 = arith.constant 0 : index
    %0 = vector.load %arg1[%c0, %c0_0] : memref<512x128xf32, #tpu.memory_space<vmem>>, vector<512x128xf32>
    %c0_1 = arith.constant 0 : index
    %c0_2 = arith.constant 0 : index
    %1 = vector.load %arg2[%c0_1, %c0_2] : memref<1x128xf32, #tpu.memory_space<vmem>>, vector<1x128xf32>
    %cst = arith.constant 0.000000e+00 : f32
    %2 = vector.broadcast %cst : f32 to vector<1x128xf32>
    %3 = arith.cmpf one, %1, %2 : vector<1x128xf32>
    %cst_3 = arith.constant 0.000000e+00 : f32
    %4 = vector.shape_cast %3 : vector<1x128xi1> to vector<1x128xi1>
    %5 = vector.broadcast %4 : vector<1x128xi1> to vector<512x128xi1>
    %6 = vector.broadcast %cst_3 : f32 to vector<512x128xf32>
    %7 = arith.select %5, %0, %6 : vector<512x128xi1>, vector<512x128xf32>
    %c0_4 = arith.constant 0 : index
    %c0_5 = arith.constant 0 : index
    %8 = vector.load %arg3[%c0_4, %c0_5] : memref<512x128xf32, #tpu.memory_space<vmem>>, vector<512x128xf32>
    tpu.vector_store %arg3[%c0_4, %c0_5], %7 {strides = array<i32>} : memref<512x128xf32, #tpu.memory_space<vmem>>, vector<512x128xf32>,
    return
  }
  func.func @transform_0(%arg0: i32) -> (i32, i32) {
    %c0_i32 = arith.constant 0 : i32
    %c0_i32_0 = arith.constant 0 : i32
    return %arg0, %c0_i32 : i32, i32
  }
  func.func @transform_1(%arg0: i32) -> (i32, i32) {
    %c0_i32 = arith.constant 0 : i32
    %c0_i32_0 = arith.constant 0 : i32
    %c0_i32_1 = arith.constant 0 : i32
    return %c0_i32, %c0_i32_0 : i32, i32
  }
  func.func @transform_2(%arg0: i32) -> (i32, i32) {
    %c0_i32 = arith.constant 0 : i32
    %c0_i32_0 = arith.constant 0 : i32
    return %arg0, %c0_i32 : i32, i32
  }
}

</mosaic_0001>

<llo_original>
// kernel: freq_mask.1
$region0: #{freq_mask.1}
  #allocation0 [shape = 'u32[]', space=smem, size = 0x4, offset = 0x4, fixed_abs, tag = 'smem constant byte address 0x4 - core index']
  #allocation1 [shape = 'u32[72,128]{1,0:T(1,128)}', space=vmem, size = 0x9000, scoped, tag = 'internal scratch']
  %s0 = inlined_call_operand.hbm [shape: f32[512,128], index: 0, kind: input, shape index: {}, may-alias: {0,2}]
  %s1 = inlined_call_operand.vmem [shape: f32[1,128], index: 1, kind: input, shape index: {}]
  %s2 = inlined_call_operand.hbm [shape: f32[512,128], index: 2, kind: output, shape index: {}, may-alias: {0,2}]
  %s3 = sld [smem:[#allocation0]]
  $region22: #{freq_mask.1} parent=0
    _
  %s5 = ssub.s32 1, %s3
  %s6 = scalar_select 0, %s5, %s3
  $region1: #{freq_mask.1} parent=0
    #allocation2 [shape = 'u8[262144]{0}', space=vmem, size = 0x40000, scoped, tag = 'input window, operand 0, single buffered']
    #allocation3 [shape = 's32[1]{0}', space=sflag, size = 0x4, scoped, tag = 'scoped memory for freq_mask.1']
    #allocation4 [shape = 's32[1]{0}', space=sflag, size = 0x4, scoped, tag = 'scoped memory for freq_mask.1']
    #allocation5 [shape = 'u8[262144]{0}', space=vmem, size = 0x40000, scoped, tag = 'output window, operand 0, single buffered']
    %7 = vsyncpa [#allocation3], 0
    %8 = vsyncpa [#allocation4], 0
    // Predicated region
    $region2: #{freq_mask.1} parent=1 // pred_check
      _
    $region3: #{freq_mask.1} parent=1 // pred_check_branch
      %10 = sbr.rel (0) target = $region5
    $region4: #{freq_mask.1} parent=1 // pred_region
      %12 = vsyncadd [#allocation3], 0
      %s13 = sshll.u32 %s0, 4
      %s14 = int_to_ptr.hbm [resolvable:$true] %s13
      %s15 = sshll.u32 [#allocation2], 4
      %s16 = int_to_ptr.vmem [resolvable:$true] %s15
      %21 = dma.hbm_to_vmem [thread:$0]  %s14, 8192, %s16, [#allocation3], 128, 128, 8
    $region5: #{freq_mask.1} parent=1 // pred_fallthru
      _
    // Predicated region
    $region6: #{freq_mask.1} parent=1 // pred_check
      _
    $region7: #{freq_mask.1} parent=1 // pred_check_branch
      %23 = sbr.rel (0) target = $region9
    $region8: #{freq_mask.1} parent=1 // pred_region
      _
    $region9: #{freq_mask.1} parent=1 // pred_fallthru
      _
    // Predicated region
    $region10: #{freq_mask.1} parent=1 // pred_check
      _
    $region11: #{freq_mask.1} parent=1 // pred_check_branch
      %25 = sbr.rel (0) target = $region13
    $region12: #{freq_mask.1} parent=1 // pred_region
      %27 = dma.done [#allocation3], 8192
    $region13: #{freq_mask.1} parent=1 // pred_fallthru
      _
    %v28 = vld [vmem:[#allocation2] sm:$0xff]
    %v29 = vld [vmem:[#allocation2 + $0x8] sm:$0xff]
    %v30 = vld [vmem:[#allocation2 + $0x10] sm:$0xff]
    %v31 = vld [vmem:[#allocation2 + $0x18] sm:$0xff]
    %v32 = vld [vmem:[#allocation2 + $0x20] sm:$0xff]
    %v33 = vld [vmem:[#allocation2 + $0x28] sm:$0xff]
    %v34 = vld [vmem:[#allocation2 + $0x30] sm:$0xff]
    %v35 = vld [vmem:[#allocation2 + $0x38] sm:$0xff]
    %v36 = vld [vmem:[#allocation2 + $0x40] sm:$0xff]
    %v37 = vld [vmem:[#allocation2 + $0x48] sm:$0xff]
    %v38 = vld [vmem:[#allocation2 + $0x50] sm:$0xff]
    %v39 = vld [vmem:[#allocation2 + $0x58] sm:$0xff]
    %v40 = vld [vmem:[#allocation2 + $0x60] sm:$0xff]
    %v41 = vld [vmem:[#allocation2 + $0x68] sm:$0xff]
    %v42 = vld [vmem:[#allocation2 + $0x70] sm:$0xff]
    %v43 = vld [vmem:[#allocation2 + $0x78] sm:$0xff]
    %v44 = vld [vmem:[#allocation2 + $0x80] sm:$0xff]
    %v45 = vld [vmem:[#allocation2 + $0x88] sm:$0xff]
    %v46 = vld [vmem:[#allocation2 + $0x90] sm:$0xff]
    %v47 = vld [vmem:[#allocation2 + $0x98] sm:$0xff]
    %v48 = vld [vmem:[#allocation2 + $0xa0] sm:$0xff]
    %v49 = vld [vmem:[#allocation2 + $0xa8] sm:$0xff]
    %v50 = vld [vmem:[#allocation2 + $0xb0] sm:$0xff]
    %v51 = vld [vmem:[#allocation2 + $0xb8] sm:$0xff]
    %v52 = vld [vmem:[#allocation2 + $0xc0] sm:$0xff]
    %v53 = vld [vmem:[#allocation2 + $0xc8] sm:$0xff]
    %v54 = vld [vmem:[#allocation2 + $0xd0] sm:$0xff]
    %v55 = vld [vmem:[#allocation2 + $0xd8] sm:$0xff]
    %v56 = vld [vmem:[#allocation2 + $0xe0] sm:$0xff]
    %v57 = vld [vmem:[#allocation2 + $0xe8] sm:$0xff]
    %v58 = vld [vmem:[#allocation2 + $0xf0] sm:$0xff]
    %v59 = vld [vmem:[#allocation2 + $0xf8] sm:$0xff]
    %v60 = vld [vmem:[#allocation2 + $0x100] sm:$0xff]
    %v61 = vld [vmem:[#allocation2 + $0x108] sm:$0xff]
    %v62 = vld [vmem:[#allocation2 + $0x110] sm:$0xff]
    %v63 = vld [vmem:[#allocation2 + $0x118] sm:$0xff]
    %v64 = vld [vmem:[#allocation2 + $0x120] sm:$0xff]
    %v65 = vld [vmem:[#allocation2 + $0x128] sm:$0xff]
    %v66 = vld [vmem:[#allocation2 + $0x130] sm:$0xff]
    %v67 = vld [vmem:[#allocation2 + $0x138] sm:$0xff]
    %v68 = vld [vmem:[#allocation2 + $0x140] sm:$0xff]
    %v69 = vld [vmem:[#allocation2 + $0x148] sm:$0xff]
    %v70 = vld [vmem:[#allocation2 + $0x150] sm:$0xff]
    %v71 = vld [vmem:[#allocation2 + $0x158] sm:$0xff]
    %v72 = vld [vmem:[#allocation2 + $0x160] sm:$0xff]
    %v73 = vld [vmem:[#allocation2 + $0x168] sm:$0xff]
    %v74 = vld [vmem:[#allocation2 + $0x170] sm:$0xff]
    %v75 = vld [vmem:[#allocation2 + $0x178] sm:$0xff]
    %v76 = vld [vmem:[#allocation2 + $0x180] sm:$0xff]
    %v77 = vld [vmem:[#allocation2 + $0x188] sm:$0xff]
    %v78 = vld [vmem:[#allocation2 + $0x190] sm:$0xff]
    %v79 = vld [vmem:[#allocation2 + $0x198] sm:$0xff]
    %v80 = vld [vmem:[#allocation2 + $0x1a0] sm:$0xff]
    %v81 = vld [vmem:[#allocation2 + $0x1a8] sm:$0xff]
    %v82 = vld [vmem:[#allocation2 + $0x1b0] sm:$0xff]
    %v83 = vld [vmem:[#allocation2 + $0x1b8] sm:$0xff]
    %v84 = vld [vmem:[#allocation2 + $0x1c0] sm:$0xff]
    %v85 = vld [vmem:[#allocation2 + $0x1c8] sm:$0xff]
    %v86 = vld [vmem:[#allocation2 + $0x1d0] sm:$0xff]
    %v87 = vld [vmem:[#allocation2 + $0x1d8] sm:$0xff]
    %v88 = vld [vmem:[#allocation2 + $0x1e0] sm:$0xff]
    %v89 = vld [vmem:[#allocation2 + $0x1e8] sm:$0xff]
    %v90 = vld [vmem:[#allocation2 + $0x1f0] sm:$0xff]
    %v91 = vld [vmem:[#allocation2 + $0x1f8] sm:$0xff]
    %v92 = vld [vmem:[%s1] sm:$0x1]
    %vm93 = vcmp.ne.f32.partialorder %v92, 0.0
    %v94 = vsel %vm93, 1, 0
    %v95 = vperm.slane %v94, 0
    %vm96 = vcmp.eq.s32.totalorder %v95, 1
    %v97 = vsel %vm96, %v28, 0.0
    %v98 = vsel %vm96, %v29, 0.0
    %v99 = vsel %vm96, %v30, 0.0
    %v100 = vsel %vm96, %v31, 0.0
    %v101 = vsel %vm96, %v32, 0.0
    %v102 = vsel %vm96, %v33, 0.0
    %v103 = vsel %vm96, %v34, 0.0
    %v104 = vsel %vm96, %v35, 0.0
    %v105 = vsel %vm96, %v36, 0.0
    %v106 = vsel %vm96, %v37, 0.0
    %v107 = vsel %vm96, %v38, 0.0
    %v108 = vsel %vm96, %v39, 0.0
    %v109 = vsel %vm96, %v40, 0.0
    %v110 = vsel %vm96, %v41, 0.0
    %v111 = vsel %vm96, %v42, 0.0
    %v112 = vsel %vm96, %v43, 0.0
    %v113 = vsel %vm96, %v44, 0.0
    %v114 = vsel %vm96, %v45, 0.0
    %v115 = vsel %vm96, %v46, 0.0
    %v116 = vsel %vm96, %v47, 0.0
    %v117 = vsel %vm96, %v48, 0.0
    %v118 = vsel %vm96, %v49, 0.0
    %v119 = vsel %vm96, %v50, 0.0
    %v120 = vsel %vm96, %v51, 0.0
    %v121 = vsel %vm96, %v52, 0.0
    %v122 = vsel %vm96, %v53, 0.0
    %v123 = vsel %vm96, %v54, 0.0
    %v124 = vsel %vm96, %v55, 0.0
    %v125 = vsel %vm96, %v56, 0.0
    %v126 = vsel %vm96, %v57, 0.0
    %v127 = vsel %vm96, %v58, 0.0
    %v128 = vsel %vm96, %v59, 0.0
    %v129 = vsel %vm96, %v60, 0.0
    %v130 = vsel %vm96, %v61, 0.0
    %v131 = vsel %vm96, %v62, 0.0
    %v132 = vsel %vm96, %v63, 0.0
    %v133 = vsel %vm96, %v64, 0.0
    %v134 = vsel %vm96, %v65, 0.0
    %v135 = vsel %vm96, %v66, 0.0
    %v136 = vsel %vm96, %v67, 0.0
    %v137 = vsel %vm96, %v68, 0.0
    %v138 = vsel %vm96, %v69, 0.0
    %v139 = vsel %vm96, %v70, 0.0
    %v140 = vsel %vm96, %v71, 0.0
    %v141 = vsel %vm96, %v72, 0.0
    %v142 = vsel %vm96, %v73, 0.0
    %v143 = vsel %vm96, %v74, 0.0
    %v144 = vsel %vm96, %v75, 0.0
    %v145 = vsel %vm96, %v76, 0.0
    %v146 = vsel %vm96, %v77, 0.0
    %v147 = vsel %vm96, %v78, 0.0
    %v148 = vsel %vm96, %v79, 0.0
    %v149 = vsel %vm96, %v80, 0.0
    %v150 = vsel %vm96, %v81, 0.0
    %v151 = vsel %vm96, %v82, 0.0
    %v152 = vsel %vm96, %v83, 0.0
    %v153 = vsel %vm96, %v84, 0.0
    %v154 = vsel %vm96, %v85, 0.0
    %v155 = vsel %vm96, %v86, 0.0
    %v156 = vsel %vm96, %v87, 0.0
    %v157 = vsel %vm96, %v88, 0.0
    %v158 = vsel %vm96, %v89, 0.0
    %v159 = vsel %vm96, %v90, 0.0
    %v160 = vsel %vm96, %v91, 0.0
    %161 = vst [vmem:[#allocation5] sm:$0xff] %v97
    %162 = vst [vmem:[#allocation5 + $0x8] sm:$0xff] %v98
    %163 = vst [vmem:[#allocation5 + $0x10] sm:$0xff] %v99
    %164 = vst [vmem:[#allocation5 + $0x18] sm:$0xff] %v100
    %165 = vst [vmem:[#allocation5 + $0x20] sm:$0xff] %v101
    %166 = vst [vmem:[#allocation5 + $0x28] sm:$0xff] %v102
    %167 = vst [vmem:[#allocation5 + $0x30] sm:$0xff] %v103
    %168 = vst [vmem:[#allocation5 + $0x38] sm:$0xff] %v104
    %169 = vst [vmem:[#allocation5 + $0x40] sm:$0xff] %v105
    %170 = vst [vmem:[#allocation5 + $0x48] sm:$0xff] %v106
    %171 = vst [vmem:[#allocation5 + $0x50] sm:$0xff] %v107
    %172 = vst [vmem:[#allocation5 + $0x58] sm:$0xff] %v108
    %173 = vst [vmem:[#allocation5 + $0x60] sm:$0xff] %v109
    %174 = vst [vmem:[#allocation5 + $0x68] sm:$0xff] %v110
    %175 = vst [vmem:[#allocation5 + $0x70] sm:$0xff] %v111
    %176 = vst [vmem:[#allocation5 + $0x78] sm:$0xff] %v112
    %177 = vst [vmem:[#allocation5 + $0x80] sm:$0xff] %v113
    %178 = vst [vmem:[#allocation5 + $0x88] sm:$0xff] %v114
    %179 = vst [vmem:[#allocation5 + $0x90] sm:$0xff] %v115
    %180 = vst [vmem:[#allocation5 + $0x98] sm:$0xff] %v116
    %181 = vst [vmem:[#allocation5 + $0xa0] sm:$0xff] %v117
    %182 = vst [vmem:[#allocation5 + $0xa8] sm:$0xff] %v118
    %183 = vst [vmem:[#allocation5 + $0xb0] sm:$0xff] %v119
    %184 = vst [vmem:[#allocation5 + $0xb8] sm:$0xff] %v120
    %185 = vst [vmem:[#allocation5 + $0xc0] sm:$0xff] %v121
    %186 = vst [vmem:[#allocation5 + $0xc8] sm:$0xff] %v122
    %187 = vst [vmem:[#allocation5 + $0xd0] sm:$0xff] %v123
    %188 = vst [vmem:[#allocation5 + $0xd8] sm:$0xff] %v124
    %189 = vst [vmem:[#allocation5 + $0xe0] sm:$0xff] %v125
    %190 = vst [vmem:[#allocation5 + $0xe8] sm:$0xff] %v126
    %191 = vst [vmem:[#allocation5 + $0xf0] sm:$0xff] %v127
    %192 = vst [vmem:[#allocation5 + $0xf8] sm:$0xff] %v128
    %193 = vst [vmem:[#allocation5 + $0x100] sm:$0xff] %v129
    %194 = vst [vmem:[#allocation5 + $0x108] sm:$0xff] %v130
    %195 = vst [vmem:[#allocation5 + $0x110] sm:$0xff] %v131
    %196 = vst [vmem:[#allocation5 + $0x118] sm:$0xff] %v132
    %197 = vst [vmem:[#allocation5 + $0x120] sm:$0xff] %v133
    %198 = vst [vmem:[#allocation5 + $0x128] sm:$0xff] %v134
    %199 = vst [vmem:[#allocation5 + $0x130] sm:$0xff] %v135
    %200 = vst [vmem:[#allocation5 + $0x138] sm:$0xff] %v136
    %201 = vst [vmem:[#allocation5 + $0x140] sm:$0xff] %v137
    %202 = vst [vmem:[#allocation5 + $0x148] sm:$0xff] %v138
    %203 = vst [vmem:[#allocation5 + $0x150] sm:$0xff] %v139
    %204 = vst [vmem:[#allocation5 + $0x158] sm:$0xff] %v140
    %205 = vst [vmem:[#allocation5 + $0x160] sm:$0xff] %v141
    %206 = vst [vmem:[#allocation5 + $0x168] sm:$0xff] %v142
    %207 = vst [vmem:[#allocation5 + $0x170] sm:$0xff] %v143
    %208 = vst [vmem:[#allocation5 + $0x178] sm:$0xff] %v144
    %209 = vst [vmem:[#allocation5 + $0x180] sm:$0xff] %v145
    %210 = vst [vmem:[#allocation5 + $0x188] sm:$0xff] %v146
    %211 = vst [vmem:[#allocation5 + $0x190] sm:$0xff] %v147
    %212 = vst [vmem:[#allocation5 + $0x198] sm:$0xff] %v148
    %213 = vst [vmem:[#allocation5 + $0x1a0] sm:$0xff] %v149
    %214 = vst [vmem:[#allocation5 + $0x1a8] sm:$0xff] %v150
    %215 = vst [vmem:[#allocation5 + $0x1b0] sm:$0xff] %v151
    %216 = vst [vmem:[#allocation5 + $0x1b8] sm:$0xff] %v152
    %217 = vst [vmem:[#allocation5 + $0x1c0] sm:$0xff] %v153
    %218 = vst [vmem:[#allocation5 + $0x1c8] sm:$0xff] %v154
    %219 = vst [vmem:[#allocation5 + $0x1d0] sm:$0xff] %v155
    %220 = vst [vmem:[#allocation5 + $0x1d8] sm:$0xff] %v156
    %221 = vst [vmem:[#allocation5 + $0x1e0] sm:$0xff] %v157
    %222 = vst [vmem:[#allocation5 + $0x1e8] sm:$0xff] %v158
    %223 = vst [vmem:[#allocation5 + $0x1f0] sm:$0xff] %v159
    %224 = vst [vmem:[#allocation5 + $0x1f8] sm:$0xff] %v160
    // Predicated region
    $region14: #{freq_mask.1} parent=1 // pred_check
      _
    $region15: #{freq_mask.1} parent=1 // pred_check_branch
      %226 = sbr.rel (0) target = $region17
    $region16: #{freq_mask.1} parent=1 // pred_region
      %228 = vsyncadd [#allocation4], 0
      %s229 = sshll.u32 [#allocation5], 4
      %s230 = int_to_ptr.vmem [resolvable:$true] %s229
      %s231 = sshll.u32 %s2, 4
      %s232 = int_to_ptr.hbm [resolvable:$true] %s231
      %237 = dma.vmem_to_hbm [thread:$0]  %s230, 8192, %s232, [#allocation4], 128, 128, 8
    $region17: #{freq_mask.1} parent=1 // pred_fallthru
      _
    // Predicated region
    $region18: #{freq_mask.1} parent=1 // pred_check
      _
    $region19: #{freq_mask.1} parent=1 // pred_check_branch
      %239 = sbr.rel (0) target = $region21
    $region20: #{freq_mask.1} parent=1 // pred_region
      %241 = dma.done [#allocation4], 8192
    $region21: #{freq_mask.1} parent=1 // pred_fallthru
      _
    %242 = vsyncpa [#allocation3], 1
    %243 = vsyncpa [#allocation4], 1

</llo_original>
